<compile_context>
chip_gen: v7x
topology: tpu7x:2x2x1
jax: 0.10.0
libtpu: 0.0.40
codegen_flags: <defaults>
</compile_context>

<pallas_src>
import jax
import jax.numpy as jnp
from jax.experimental import pallas as pl
from jax.experimental.pallas import tpu as pltpu


def _round_up(x, m):
    return (x + m - 1) // m * m


def nnlm_kernel(x2_ref, a_ref, b_ref, out_ref):
    # Single K=2H MXU product per (row-tile, vocab-tile); f32 accumulation, f32 bias
    # add directly on the accumulator, then store.
    out_ref[...] = (
        jnp.dot(x2_ref[...], a_ref[...], preferred_element_type=jnp.float32)
        + b_ref[...]
    ).astype(out_ref.dtype)


def _vmem_budget_bytes():
    try:
        phys = pltpu.get_tpu_info().vmem_capacity_bytes
    except Exception:
        phys = 64 << 20          # assume the smallest case (v7x per-TC) if query fails
    return (phys * 3) // 4       # leave headroom for Mosaic internal scratch


def nnlm_forward(text, embed_table, conv_w, conv_b, fc_w, fc_b,
                 *, row_tile=1024, col_tile=2048,
                 compute_dtype=jnp.bfloat16, out_dtype=jnp.float32):
    """text: (S, B) int32 token ids.  Returns (S*B, V) logits, matching
    `self.fc(self.layers(y)).view(-1, len(TEXT.vocab))` of the PyTorch module."""
    S, B = text.shape
    V, H = embed_table.shape
    N = S * B
    itemsize = jnp.dtype(compute_dtype).itemsize
    out_itemsize = jnp.dtype(out_dtype).itemsize

    # ---- fold conv taps into the fc weight and merge the two K=H matmuls into K=2H ----
    wfct = fc_w.T                                                  # (H, V)
    a0 = jnp.dot(conv_w[:, :, 0].T, wfct)                          # (H, V) tap on x[t-1]
    a1 = jnp.dot(conv_w[:, :, 1].T, wfct)                          # (H, V) tap on x[t]
    a = jnp.concatenate([a0, a1], axis=0).astype(compute_dtype)    # (2H, V)
    b_eff = (jnp.dot(conv_b, wfct) + fc_b).reshape(1, V).astype(jnp.float32)

    # ---- activations: embedding gather + zero-left-pad time shift, done once in HBM ----
    x = jnp.take(embed_table.astype(compute_dtype), text, axis=0)  # (S, B, H)
    x_prev = jnp.concatenate([jnp.zeros((1, B, H), x.dtype), x[:-1]], axis=0)
    x2 = jnp.concatenate([x_prev, x], axis=2).reshape(N, 2 * H)    # (N, 2H)

    # ---- tile sizing: rt multiple of 16 (bf16 sublane packing), ct multiple of 128 ----
    rt = min(_round_up(row_tile, 16), _round_up(N, 16))
    ct = max(128, min(_round_up(col_tile, 128), _round_up(V, 128)))

    budget = _vmem_budget_bytes()

    def _footprint(rt_, ct_):
        # double-buffered input blocks + bias + output block
        return 2 * (rt_ * 2 * H * itemsize
                    + 2 * H * ct_ * itemsize
                    + ct_ * 4
                    + rt_ * ct_ * out_itemsize)

    while _footprint(rt, ct) > budget and (ct > 128 or rt > 16):
        if ct > 128:
            ct //= 2
        else:
            rt = max(16, _round_up(rt // 2, 16))

    # guarantee >= 2 row tiles when possible so the parallel axes can shard across
    # both TensorCores on v7x
    if pl.cdiv(N, rt) < 2 and N > 16:
        rt = _round_up(pl.cdiv(N, 2), 16)

    n_row_tiles = pl.cdiv(N, rt)
    n_pad = n_row_tiles * rt
    n_col_tiles = pl.cdiv(V, ct)
    v_pad = n_col_tiles * ct

    if n_pad != N:
        x2 = jnp.pad(x2, ((0, n_pad - N), (0, 0)))
    if v_pad != V:
        a = jnp.pad(a, ((0, 0), (0, v_pad - V)))
        b_eff = jnp.pad(b_eff, ((0, 0), (0, v_pad - V)))

    # ---- grid ordering: the outer axis' operand stays resident (read once in total);
    # the inner axis' operand is re-streamed.  Pick the ordering with less HBM traffic.
    act_bytes = n_pad * 2 * H * itemsize
    w_bytes = 2 * H * v_pad * itemsize
    rows_outer = (n_row_tiles * w_bytes + act_bytes) <= (n_col_tiles * act_bytes + w_bytes)

    if rows_outer:
        grid = (n_row_tiles, n_col_tiles)
        row_of = lambda i, j: i
        col_of = lambda i, j: j
    else:
        grid = (n_col_tiles, n_row_tiles)
        row_of = lambda i, j: j
        col_of = lambda i, j: i

    vmem_limit = int(min(budget, max(_footprint(rt, ct) + (4 << 20), 16 << 20)))

    out = pl.pallas_call(
        nnlm_kernel,
        out_shape=jax.ShapeDtypeStruct((n_pad, v_pad), out_dtype),
        grid_spec=pltpu.PrefetchScalarGridSpec(
            num_scalar_prefetch=0,
            grid=grid,
            in_specs=[
                pl.BlockSpec((rt, 2 * H), lambda i, j: (row_of(i, j), 0)),   # activations
                pl.BlockSpec((2 * H, ct), lambda i, j: (0, col_of(i, j))),   # fused weight
                pl.BlockSpec((1, ct), lambda i, j: (0, col_of(i, j))),       # fused bias
            ],
            out_specs=pl.BlockSpec((rt, ct),
                                   lambda i, j: (row_of(i, j), col_of(i, j))),
        ),
        compiler_params=pltpu.CompilerParams(
            dimension_semantics=("parallel", "parallel"),
            vmem_limit_bytes=vmem_limit),
    )(x2, a, b_eff)

    return out[:N, :V]


def nnlm_reference(text, embed_table, conv_w, conv_b, fc_w, fc_b):
    """Pure-JAX f32 reference mirroring the PyTorch forward, for verification."""
    S, B = text.shape
    V, H = embed_table.shape
    x = jnp.take(embed_table, text, axis=0)                        # (S, B, H)
    x_pad = jnp.concatenate([jnp.zeros((1, B, H), x.dtype), x], axis=0)
    y = (jnp.einsum('sbh,oh->sbo', x_pad[:-1], conv_w[:, :, 0]) +
         jnp.einsum('sbh,oh->sbo', x_pad[1:], conv_w[:, :, 1]) + conv_b)
    logits = jnp.einsum('sbh,vh->sbv', y, fc_w) + fc_b
    return logits.reshape(-1, V)


if __name__ == "__main__":
    S, B, H, V = 15, 2, 32, 256   # seq, batch, hidden_size, len(TEXT.vocab)

    key = jax.random.PRNGKey(0)
    k_emb, k_cw, k_cb, k_fw, k_fb, k_txt = jax.random.split(key, 6)

    embed_table = jax.random.normal(k_emb, (V, H), jnp.float32) * 0.1
    embed_table = embed_table.at[1].set(0.0)   # padding-idx row zero-initialized

    conv_w = jax.random.normal(k_cw, (H, H, 2), jnp.float32) * 0.1   # (out, in, k)
    conv_b = jax.random.normal(k_cb, (H,), jnp.float32) * 0.1
    fc_w = jax.random.normal(k_fw, (V, H), jnp.float32) * 0.1        # (out, in)
    fc_b = jax.random.normal(k_fb, (V,), jnp.float32) * 0.1

    text = jax.random.randint(k_txt, (S, B), 0, V, dtype=jnp.int32)

    ref = nnlm_reference(text, embed_table, conv_w, conv_b, fc_w, fc_b)

    # default (auto-sized) path
    out = nnlm_forward(text, embed_table, conv_w, conv_b, fc_w, fc_b)
    out = jax.block_until_ready(out)
    assert out.shape == (S * B, V), out.shape
    assert jnp.allclose(out, ref, atol=2e-2, rtol=2e-2), "mismatch vs reference (default tiling)"

    # small-tile path: exercises multiple row AND vocab tiles plus row-remainder padding
    out_small = nnlm_forward(text, embed_table, conv_w, conv_b, fc_w, fc_b,
                             row_tile=16, col_tile=128)
    out_small = jax.block_until_ready(out_small)
    assert jnp.allclose(out_small, ref, atol=2e-2, rtol=2e-2), "mismatch vs reference (small tiles)"

    print("KERNEL_OK")
</pallas_src>

<mosaic_0001>
module attributes {stable_mosaic.version = 11 : i64} {
  func.func @nnlm_kernel(%arg0: i32, %arg1: i32, %arg2: memref<16x64xbf16, #tpu.memory_space<vmem>>, %arg3: memref<64x256xbf16, #tpu.memory_space<vmem>>, %arg4: memref<1x256xf32, #tpu.memory_space<vmem>>, %arg5: memref<16x256xf32, #tpu.memory_space<vmem>>) attributes {dimension_semantics = [#tpu.dimension_semantics<parallel>, #tpu.dimension_semantics<parallel>], iteration_bounds = array<i64: 1, 2>, scalar_prefetch = 0 : i64, scratch_operands = 0 : i64, tpu.core_type = #tpu.core_type<tc>, window_params = [{transform_indices = @transform_0, window_bounds = array<i64: 16, 64>}, {transform_indices = @transform_1, window_bounds = array<i64: 64, 256>}, {transform_indices = @transform_2, window_bounds = array<i64: 1, 256>}, {transform_indices = @transform_3, window_bounds = array<i64: 16, 256>}]} {
    %c0 = arith.constant 0 : index
    %c0_0 = arith.constant 0 : index
    %0 = vector.load %arg2[%c0, %c0_0] : memref<16x64xbf16, #tpu.memory_space<vmem>>, vector<16x64xbf16>
    %c0_1 = arith.constant 0 : index
    %c0_2 = arith.constant 0 : index
    %1 = vector.load %arg3[%c0_1, %c0_2] : memref<64x256xbf16, #tpu.memory_space<vmem>>, vector<64x256xbf16>
    %cst = arith.constant dense<0.000000e+00> : vector<16x256xf32>
    %2 = tpu.matmul %0, %1, %cst {dimension_numbers = #tpu.dot_dimension_numbers<[1], [0], [0], [1], [0, 0, 1, 1], [], []>} : vector<16x64xbf16>, vector<64x256xbf16>, vector<16x256xf32> -> vector<16x256xf32>
    %c0_3 = arith.constant 0 : index
    %c0_4 = arith.constant 0 : index
    %3 = vector.load %arg4[%c0_3, %c0_4] : memref<1x256xf32, #tpu.memory_space<vmem>>, vector<1x256xf32>
    %4 = vector.broadcast %3 : vector<1x256xf32> to vector<16x256xf32>
    %5 = arith.addf %2, %4 : vector<16x256xf32>
    %c0_5 = arith.constant 0 : index
    %c0_6 = arith.constant 0 : index
    %6 = vector.load %arg5[%c0_5, %c0_6] : memref<16x256xf32, #tpu.memory_space<vmem>>, vector<16x256xf32>
    tpu.vector_store %arg5[%c0_5, %c0_6], %5 {strides = array<i32>} : memref<16x256xf32, #tpu.memory_space<vmem>>, vector<16x256xf32>,
    return
  }
  func.func @transform_0(%arg0: i32, %arg1: i32) -> (i32, i32) {
    %c0_i32 = arith.constant 0 : i32
    %c0_i32_0 = arith.constant 0 : i32
    return %arg1, %c0_i32 : i32, i32
  }
  func.func @transform_1(%arg0: i32, %arg1: i32) -> (i32, i32) {
    %c0_i32 = arith.constant 0 : i32
    %c0_i32_0 = arith.constant 0 : i32
    return %c0_i32, %arg0 : i32, i32
  }
  func.func @transform_2(%arg0: i32, %arg1: i32) -> (i32, i32) {
    %c0_i32 = arith.constant 0 : i32
    %c0_i32_0 = arith.constant 0 : i32
    return %c0_i32, %arg0 : i32, i32
  }
  func.func @transform_3(%arg0: i32, %arg1: i32) -> (i32, i32) {
    %c0_i32 = arith.constant 0 : i32
    return %arg1, %arg0 : i32, i32
  }
}

</mosaic_0001>

<llo_original>
// kernel: tpu_custom_call.1
$region0: #{tpu_custom_call.1}
  #allocation0 [shape = 'u32[]', space=smem, size = 0x4, offset = 0x4, fixed_abs, tag = 'smem constant byte address 0x4 - core index']
  #allocation1 [shape = 'u32[144,128]{1,0:T(1,128)}', space=vmem, size = 0x12000, scoped, tag = 'internal scratch']
  %s0 = inlined_call_operand.hbm [shape: bf16[32,64], index: 0, kind: input, shape index: {}]
  %s1 = inlined_call_operand.hbm [shape: bf16[64,256], index: 1, kind: input, shape index: {}]
  %s2 = inlined_call_operand.vmem [shape: f32[1,256], index: 2, kind: input, shape index: {}]
  %s3 = inlined_call_operand.hbm [shape: f32[32,256], index: 3, kind: output, shape index: {}]
  %s4 = sld [smem:[#allocation0]]
  $region53: #{tpu_custom_call.1} parent=0
    _
  %s6 = ssub.s32 1, %s4
  %s7 = scalar_select 0, %s6, %s4
  $region1: #{tpu_custom_call.1} parent=0
    #allocation2 [shape = 'u8[8192]{0}', space=vmem, size = 0x2000, scoped, tag = 'input window, operand 0']
    #allocation3 [shape = 's32[2]{0}', space=sflag, size = 0x8, scoped, tag = 'scoped memory for tpu_custom_call.1']
    #allocation4 [shape = 's32[2]{0}', space=sflag, size = 0x8, scoped, tag = 'scoped memory for tpu_custom_call.1']
    #allocation5 [shape = 'u8[32768]{0}', space=vmem, size = 0x8000, scoped, tag = 'input window, operand 1, single buffered']
    #allocation6 [shape = 's32[1]{0}', space=sflag, size = 0x4, scoped, tag = 'scoped memory for tpu_custom_call.1']
    #allocation7 [shape = 'u8[32768]{0}', space=vmem, size = 0x8000, scoped, tag = 'output window, operand 0']
    %8 = vsyncpa [#allocation3], 0
    %s9 = scalar_lea.sflag [#allocation3], 1
    %10 = vsyncpa %s9, 0
    %11 = vsyncpa [#allocation6], 0
    %12 = vsyncpa [#allocation4], 0
    %s13 = scalar_lea.sflag [#allocation4], 1
    %14 = vsyncpa %s13, 0
    loop: start=0, step=1, limit=4
    $region2: #{tpu_custom_call.1} parent=1 // loop_pre_header
      _
    $region3: #{tpu_custom_call.1} parent=1 // loop_header
      %s16 = sphi 0, %s20
      %p17 = scmp.ge.s32.totalorder %s16, 4
      %s23 = sphi 0, %s35
      %s24 = sphi 0, %s31
      %s25 = sphi 0, %s23
      %s26 = sphi 0, %s24
      %s27 = sphi 0, %s25
      %s28 = sphi 0, %s26
      %s38 = sphi 0, %s40
      %s41 = sphi 0, %s38
      %s42 = sphi 0, %s41
      %s58 = sphi 0, %s42
      %s64 = sphi 0, %s66
      %s67 = sphi 0, %s64
      %s68 = sphi 0, %s67
      %s84 = sphi 0, %s68
      %s90 = sphi 0, %s92
      %s93 = sphi 0, %s90
      %s94 = sphi 0, %s93
      %s110 = sphi 0, %s94
      %s118 = sphi 0, %s120
      %s121 = sphi 0, %s118
      %s122 = sphi 0, %s121
      %s138 = sphi 0, %s122
    $region4: #{tpu_custom_call.1} parent=1 // loop_header_branch
      %19 = sbr.rel (%p17) target = $region8
    $region5: #{tpu_custom_call.1} parent=1 // loop_body
      %s21 = ssub.s32 %s16, 1
      %s22 = ssub.s32 %s16, 2
      %s29 = sadd.s32 1, %s24
      %p30 = scmp.ge.s32.totalorder %s29, 2
      %s31 = scalar_select %p30, 0, %s29
      %s32 = sadd.s32 1, %s23
      %s33 = scalar_select %p30, %s32, %s23
      %p34 = scmp.ge.s32.totalorder %s33, 1
      %s35 = scalar_select %p34, 0, %s33
      %s36 = ssub.s32 %s24, %s31
      %p37 = scmp.eq.s32.totalorder %s36, 0
      %s39 = sadd.s32 %s38, 1
      %s40 = scalar_select %p37, %s38, %s39
      %p43 = pneg %p37
      %p44 = scmp.eq.s32.totalorder %s16, 1
      %p45 = por %p43, %p44
      %p46 = scmp.ne.s32.totalorder %s38, %s41
      %p47 = scmp.eq.s32.totalorder %s16, 0
      %p48 = por %p46, %p47
      %p49 = scmp.ne.s32.totalorder %s38, %s41
      %p50 = scmp.eq.s32.totalorder %s21, 1
      %p51 = por %p49, %p50
      %p52 = scmp.ne.s32.totalorder %s41, %s42
      %p53 = scmp.eq.s32.totalorder %s21, 0
      %p54 = por %p52, %p53
      %p55 = scmp.ne.s32.totalorder %s41, %s42
      %p56 = scmp.eq.s32.totalorder %s22, 1
      %p57 = por %p55, %p56
      %p59 = scmp.ne.s32.totalorder %s42, %s58
      %p60 = scmp.eq.s32.totalorder %s22, 0
      %p61 = por %p59, %p60
      %s62 = ssub.s32 %s23, %s35
      %p63 = scmp.eq.s32.totalorder %s62, 0
      %s65 = sadd.s32 %s64, 1
      %s66 = scalar_select %p63, %s64, %s65
      %p69 = pneg %p63
      %p70 = scmp.eq.s32.totalorder %s16, 1
      %p71 = por %p69, %p70
      %p72 = scmp.ne.s32.totalorder %s64, %s67
      %p73 = scmp.eq.s32.totalorder %s16, 0
      %p74 = por %p72, %p73
      %p75 = scmp.ne.s32.totalorder %s64, %s67
      %p76 = scmp.eq.s32.totalorder %s21, 1
      %p77 = por %p75, %p76
      %p78 = scmp.ne.s32.totalorder %s67, %s68
      %p79 = scmp.eq.s32.totalorder %s21, 0
      %p80 = por %p78, %p79
      %p81 = scmp.ne.s32.totalorder %s67, %s68
      %p82 = scmp.eq.s32.totalorder %s22, 1
      %p83 = por %p81, %p82
      %p85 = scmp.ne.s32.totalorder %s68, %s84
      %p86 = scmp.eq.s32.totalorder %s22, 0
      %p87 = por %p85, %p86
      %s88 = ssub.s32 %s23, %s35
      %p89 = scmp.eq.s32.totalorder %s88, 0
      %s91 = sadd.s32 %s90, 1
      %s92 = scalar_select %p89, %s90, %s91
      %p95 = pneg %p89
      %p96 = scmp.eq.s32.totalorder %s16, 1
      %p97 = por %p95, %p96
      %p98 = scmp.ne.s32.totalorder %s90, %s93
      %p99 = scmp.eq.s32.totalorder %s16, 0
      %p100 = por %p98, %p99
      %p101 = scmp.ne.s32.totalorder %s90, %s93
      %p102 = scmp.eq.s32.totalorder %s21, 1
      %p103 = por %p101, %p102
      %p104 = scmp.ne.s32.totalorder %s93, %s94
      %p105 = scmp.eq.s32.totalorder %s21, 0
      %p106 = por %p104, %p105
      %p107 = scmp.ne.s32.totalorder %s93, %s94
      %p108 = scmp.eq.s32.totalorder %s22, 1
      %p109 = por %p107, %p108
      %p111 = scmp.ne.s32.totalorder %s94, %s110
      %p112 = scmp.eq.s32.totalorder %s22, 0
      %p113 = por %p111, %p112
      %s114 = ssub.s32 %s24, %s31
      %s115 = ssub.s32 %s23, %s35
      %s116 = sor.u32 %s114, %s115
      %p117 = scmp.eq.s32.totalorder %s116, 0
      %s119 = sadd.s32 %s118, 1
      %s120 = scalar_select %p117, %s118, %s119
      %p123 = pneg %p117
      %p124 = scmp.eq.s32.totalorder %s16, 1
      %p125 = por %p123, %p124
      %p126 = scmp.ne.s32.totalorder %s118, %s121
      %p127 = scmp.eq.s32.totalorder %s16, 0
      %p128 = por %p126, %p127
      %p129 = scmp.ne.s32.totalorder %s118, %s121
      %p130 = scmp.eq.s32.totalorder %s21, 1
      %p131 = por %p129, %p130
      %p132 = scmp.ne.s32.totalorder %s121, %s122
      %p133 = scmp.eq.s32.totalorder %s21, 0
      %p134 = por %p132, %p133
      %p135 = scmp.ne.s32.totalorder %s121, %s122
      %p136 = scmp.eq.s32.totalorder %s22, 1
      %p137 = por %p135, %p136
      %p139 = scmp.ne.s32.totalorder %s122, %s138
      %p140 = scmp.eq.s32.totalorder %s22, 0
      %p141 = por %p139, %p140
      %p142 = scmp.le.s32.totalorder 1, %s16
      %p143 = scmp.lt.s32.totalorder %s16, 3
      %p144 = pnand %p142, %p143
      %p145 = pneg %p144
      // Predicated region
      $region9: #{tpu_custom_call.1} parent=5 // pred_check
        _
      $region10: #{tpu_custom_call.1} parent=5 // pred_check_branch
        %147 = sbr.rel (%p144) target = $region12
      $region11: #{tpu_custom_call.1} parent=5 // pred_region
        %s148 = ssub.s32 %s16, 1
        // Predicated region
        $region13: #{tpu_custom_call.1} parent=11 // pred_check
          %p149 = pneg %p80
        $region14: #{tpu_custom_call.1} parent=11 // pred_check_branch
          %151 = sbr.rel (%p149) target = $region16
        $region15: #{tpu_custom_call.1} parent=11 // pred_region
          %s152 = smul.u32 2, %s25
          %s154 = ssub.s32 1024, 1024
          %155 = vsyncadd [#allocation6], %s154
          %s156 = smul.addr %s152, 64
          %s157 = scalar_lea.hbm %s1, %s156
          %s158 = sshll.u32 [#allocation5], 4
          %s159 = int_to_ptr.vmem [resolvable:$true] %s158
          %164 = dma.hbm_to_vmem [thread:$0]  %s157, 1024, %s159, [#allocation6], 128, 128, 8
        $region16: #{tpu_custom_call.1} parent=11 // pred_fallthru
          _
        // Predicated region
        $region17: #{tpu_custom_call.1} parent=11 // pred_check
          %p165 = pneg %p106
        $region18: #{tpu_custom_call.1} parent=11 // pred_check_branch
          %167 = sbr.rel (%p165) target = $region20
        $region19: #{tpu_custom_call.1} parent=11 // pred_region
          %s168 = smul.u32 2, %s25
          %p169 = scmp.lt.s32.totalorder %s168, 1
          %s170 = scalar_select %p169, %s168, 1
          %s171 = scalar_lea.vmem %s2, %s170
          %s172 = smul.u32 2, %s25
        $region20: #{tpu_custom_call.1} parent=11 // pred_fallthru
          _
      $region12: #{tpu_custom_call.1} parent=5 // pred_fallthru
        _
      %p173 = scmp.lt.s32.totalorder %s16, 2
      // Predicated region
      $region21: #{tpu_custom_call.1} parent=5 // pred_check
        %p174 = pneg %p173
      $region22: #{tpu_custom_call.1} parent=5 // pred_check_branch
        %176 = sbr.rel (%p174) target = $region24
      $region23: #{tpu_custom_call.1} parent=5 // pred_region
        // Predicated region
        $region25: #{tpu_custom_call.1} parent=23 // pred_check
          %p177 = pneg %p48
        $region26: #{tpu_custom_call.1} parent=23 // pred_check_branch
          %179 = sbr.rel (%p177) target = $region28
        $region27: #{tpu_custom_call.1} parent=23 // pred_region
          %s180 = sand.u32 %s38, 1
          %s181 = scalar_lea.sflag [#allocation3], %s180
          %s182 = sand.u32 %s38, 1
          %s183 = smul.addr %s182, 8
          %s184 = scalar_lea.vmem [#allocation2], %s183
          %s185 = smul.u32 2, %s24
          %s187 = ssub.s32 128, 128
          %188 = vsyncadd %s181, %s187
          %s189 = smul.addr %s185, 64
          %s190 = scalar_lea.hbm %s0, %s189
          %s191 = sshll.u32 %s184, 4
          %s192 = int_to_ptr.vmem [resolvable:$true] %s191
          %197 = dma.hbm_to_vmem [thread:$0]  %s190, 128, %s192, %s181, 64, 64, 4
        $region28: #{tpu_custom_call.1} parent=23 // pred_fallthru
          _
      $region24: #{tpu_custom_call.1} parent=5 // pred_fallthru
        _
      %p198 = scmp.le.s32.totalorder 1, %s16
      %p199 = scmp.lt.s32.totalorder %s16, 3
      %p200 = pnand %p198, %p199
      %p201 = pneg %p200
      // Predicated region
      $region29: #{tpu_custom_call.1} parent=5 // pred_check
        _
      $region30: #{tpu_custom_call.1} parent=5 // pred_check_branch
        %203 = sbr.rel (%p200) target = $region32
      $region31: #{tpu_custom_call.1} parent=5 // pred_region
        %s204 = ssub.s32 %s16, 1
        %s205 = sand.u32 %s41, 1
        %s206 = scalar_lea.sflag [#allocation3], %s205
        %s207 = sand.u32 %s41, 1
        %s208 = smul.addr %s207, 8
        %s209 = scalar_lea.vmem [#allocation2], %s208
        // Predicated region
        $region33: #{tpu_custom_call.1} parent=31 // pred_check
          %p210 = pneg %p54
        $region34: #{tpu_custom_call.1} parent=31 // pred_check_branch
          %212 = sbr.rel (%p210) target = $region36
        $region35: #{tpu_custom_call.1} parent=31 // pred_region
          %213 = dma.done %s206, 128
        $region36: #{tpu_custom_call.1} parent=31 // pred_fallthru
          _
        // Predicated region
        $region37: #{tpu_custom_call.1} parent=31 // pred_check
          %p214 = pneg %p80
        $region38: #{tpu_custom_call.1} parent=31 // pred_check_branch
          %216 = sbr.rel (%p214) target = $region40
        $region39: #{tpu_custom_call.1} parent=31 // pred_region
          %217 = dma.done [#allocation6], 1024
        $region40: #{tpu_custom_call.1} parent=31 // pred_fallthru
          _
        %s218 = sand.u32 %s41, 1
        %s219 = scalar_lea.sflag [#allocation3], %s218
        %s220 = sand.u32 %s41, 1
        %s221 = smul.addr %s220, 8
        %s222 = scalar_lea.vmem [#allocation2], %s221
        %p223 = pneg %p54
        %p224 = pneg %p51
        %p225 = pneg %p80
        %p226 = pneg %p77
        %s227 = smul.u32 2, %s25
        %p228 = scmp.lt.s32.totalorder %s227, 1
        %s229 = scalar_select %p228, %s227, 1
        %s230 = scalar_lea.vmem %s2, %s229
        %p231 = pneg %p106
        %p232 = pneg %p103
        %p233 = pneg %p134
        %p234 = pneg %p131
        %s235 = sand.u32 %s121, 1
        %s236 = scalar_lea.sflag [#allocation4], %s235
        %s237 = sand.u32 %s121, 1
        %s238 = smul.addr %s237, 32
        %s239 = scalar_lea.vmem [#allocation7], %s238
        %s240 = smul.u32 2, %s26
        %s241 = smul.u32 2, %s25
        %s242 = smul.u32 2, %s25
        %p243 = scmp.lt.s32.totalorder %s242, 1
        %s244 = scalar_select %p243, %s242, 1
        %s245 = scalar_lea.vmem %s2, %s244
        %s246 = smul.u32 2, %s25
        %s247 = smul.u32 2, %s26
        %s248 = smul.u32 2, %s25
        %v250 = vld [vmem:[%s209] sm:$0xf]
        %v251 = vld [vmem:[%s209 + $0x4] sm:$0xf]
        %v252 = vld [vmem:[#allocation5] sm:$0xff]
        %v253 = vld [vmem:[#allocation5 + $0x8] sm:$0xff]
        %v254 = vld [vmem:[#allocation5 + $0x10] sm:$0xff]
        %v255 = vld [vmem:[#allocation5 + $0x18] sm:$0xff]
        %v256 = vld [vmem:[#allocation5 + $0x20] sm:$0xff]
        %v257 = vld [vmem:[#allocation5 + $0x28] sm:$0xff]
        %v258 = vld [vmem:[#allocation5 + $0x30] sm:$0xff]
        %v259 = vld [vmem:[#allocation5 + $0x38] sm:$0xff]
        %v260 = vld [vmem:[%s245] sm:$0x3]
        %v262 = vlaneseq
        %v263 = vshrl.u32 %v262, 7
        %v264 = vsub.s32 0, %v263
        %v265 = vrot.slane %v260, %v264
        %v266 = vlaneseq
        %v267 = vshrl.u32 %v266, 7
        %v268 = vsub.s32 1, %v267
        %v269 = vrot.slane %v260, %v268
        %v274 = vunpack.c.l.b16 %v250
        %v275 = vunpack.c.l.b16 %v251
        %v276 = vpack.c.b16 %v275, %v274
        %v285 = vunpack.c.l.b16 %v252
        %v286 = vunpack.c.h.b16 %v252
        %v287 = vunpack.c.l.b16 %v253
        %v288 = vunpack.c.h.b16 %v253
        %v289 = vunpack.c.l.b16 %v254
        %v290 = vunpack.c.h.b16 %v254
        %v291 = vunpack.c.l.b16 %v255
        %v292 = vunpack.c.h.b16 %v255
        %v293 = vunpack.c.l.b16 %v256
        %v294 = vunpack.c.h.b16 %v256
        %v295 = vunpack.c.l.b16 %v257
        %v296 = vunpack.c.h.b16 %v257
        %v297 = vunpack.c.l.b16 %v258
        %v298 = vunpack.c.h.b16 %v258
        %v299 = vunpack.c.l.b16 %v259
        %v300 = vunpack.c.h.b16 %v259
        %v301 = vpack.c.b16 %v287, %v285
        %v302 = vpack.c.b16 %v288, %v286
        %v303 = vpack.c.b16 %v291, %v289
        %v304 = vpack.c.b16 %v292, %v290
        %v305 = vpack.c.b16 %v295, %v293
        %v306 = vpack.c.b16 %v296, %v294
        %v307 = vpack.c.b16 %v299, %v297
        %v308 = vpack.c.b16 %v300, %v298
        %vm317 = vcmask 523264
        %v319 = vsel %vm317, %v276, 0
        %321 = vmatprep.subr.bf16.mxu0 %v302
        %322 = vmatpush1.bf16.msra.mxu0 %v301
        %323 = vmatprep.subr.bf16.mxu0 %v304
        %324 = vmatpush1.bf16.msra.mxu0 %v303
        %325 = vmatprep.subr.bf16.mxu0 %v306
        %326 = vmatpush1.bf16.msra.mxu0 %v305
        %327 = vmatprep.subr.bf16.mxu0 %v308
        %328 = vmatpush1.bf16.msra.mxu0 %v307
        %329 = vmatprep.subr.bf16.mxu0 0
        %330 = vmatpush1.bf16.msra.mxu0 0
        %331 = vmatprep.subr.bf16.mxu0 0
        %332 = vmatpush1.bf16.msra.mxu0 0
        %333 = vmatprep.subr.bf16.mxu0 0
        %334 = vmatpush1.bf16.msra.mxu0 0
        %335 = vmatprep.subr.bf16.mxu0 0
        %336 = vmatpush1.bf16.msra.mxu0 0
        %337 = vmatprep.subr.bf16.mxu0 0
        %338 = vmatpush1.bf16.msra.mxu0 0
        %339 = vmatprep.subr.bf16.mxu0 0
        %340 = vmatpush1.bf16.msra.mxu0 0
        %341 = vmatprep.subr.bf16.mxu0 0
        %342 = vmatpush1.bf16.msra.mxu0 0
        %343 = vmatprep.subr.bf16.mxu0 0
        %344 = vmatpush1.bf16.msra.mxu0 0
        %345 = vmatprep.subr.bf16.mxu0 0
        %346 = vmatpush1.bf16.msra.mxu0 0
        %347 = vmatprep.subr.bf16.mxu0 0
        %348 = vmatpush1.bf16.msra.mxu0 0
        %349 = vmatprep.subr.bf16.mxu0 0
        %350 = vmatpush1.bf16.msra.mxu0 0
        %351 = vmatprep.subr.bf16.mxu0 0
        %352 = vmatpush1.bf16.msra.mxu0 0
        %353 = vmatprep.mubr.bf16.mxu0 0
        %354 = vmatmul.mubr.bf16.gmra.mrb[0].mxu0 %v319
        %v355 = vpop.f32.mrb[0].mxu0
        %v356 = vadd.f32 %v265, %v355
        %v357 = vpop.f32.mrb[0].mxu0
        %v358 = vadd.f32 %v269, %v357
        %v359 = vpop.f32.mrb[0].mxu0
        %v360 = vadd.f32 %v265, %v359
        %v361 = vpop.f32.mrb[0].mxu0
        %v362 = vadd.f32 %v269, %v361
        %363 = vdwg.mxu0
        %364 = vst [vmem:[%s239] sm:$0xff] %v356
        %365 = vst [vmem:[%s239 + $0x8] sm:$0xff] %v358
        %366 = vst [vmem:[%s239 + $0x10] sm:$0xff] %v360
        %367 = vst [vmem:[%s239 + $0x18] sm:$0xff] %v362
        %s368 = sand.u32 %s121, 1
        %s369 = scalar_lea.sflag [#allocation4], %s368
        %s370 = sand.u32 %s121, 1
        %s371 = smul.addr %s370, 32
        %s372 = scalar_lea.vmem [#allocation7], %s371
        // Predicated region
        $region41: #{tpu_custom_call.1} parent=31 // pred_check
          %p373 = pneg %p131
        $region42: #{tpu_custom_call.1} parent=31 // pred_check_branch
          %375 = sbr.rel (%p373) target = $region44
        $region43: #{tpu_custom_call.1} parent=31 // pred_region
          %s376 = smul.u32 2, %s26
          %s377 = smul.u32 2, %s25
          %s379 = ssub.s32 512, 512
          %380 = vsyncadd %s369, %s379
          %s381 = smul.addr %s376, 2
          %s382 = sadd.s32 %s377, %s381
          %s383 = smul.addr %s382, 128
          %s384 = scalar_lea.hbm %s3, %s383
          %s385 = sshll.u32 %s372, 4
          %s386 = int_to_ptr.vmem [resolvable:$true] %s385
          %391 = dma.vmem_to_hbm [thread:$0]  %s386, 512, %s384, %s369, 256, 256, 16
        $region44: #{tpu_custom_call.1} parent=31 // pred_fallthru
          _
      $region32: #{tpu_custom_call.1} parent=5 // pred_fallthru
        _
      %p392 = scmp.le.s32.totalorder 2, %s16
      // Predicated region
      $region45: #{tpu_custom_call.1} parent=5 // pred_check
        %p393 = pneg %p392
      $region46: #{tpu_custom_call.1} parent=5 // pred_check_branch
        %395 = sbr.rel (%p393) target = $region48
      $region47: #{tpu_custom_call.1} parent=5 // pred_region
        %s396 = ssub.s32 %s16, 2
        // Predicated region
        $region49: #{tpu_custom_call.1} parent=47 // pred_check
          %p397 = pneg %p137
        $region50: #{tpu_custom_call.1} parent=47 // pred_check_branch
          %399 = sbr.rel (%p397) target = $region52
        $region51: #{tpu_custom_call.1} parent=47 // pred_region
          %s400 = sand.u32 %s122, 1
          %s401 = scalar_lea.sflag [#allocation4], %s400
          %s402 = sand.u32 %s122, 1
          %s403 = smul.addr %s402, 32
          %s404 = scalar_lea.vmem [#allocation7], %s403
          %405 = dma.done %s401, 512
        $region52: #{tpu_custom_call.1} parent=47 // pred_fallthru
          _
      $region48: #{tpu_custom_call.1} parent=5 // pred_fallthru
        _
    $region6: #{tpu_custom_call.1} parent=1 // loop_footer
      %s20 = sadd.s32 1, %s16
    $region7: #{tpu_custom_call.1} parent=1 // loop_footer_branch
      %15 = sbr.rel target = $region3
    $region8: #{tpu_custom_call.1} parent=1 // loop_exit
      _
    %406 = vsyncpa [#allocation3], 1
    %s407 = scalar_lea.sflag [#allocation3], 1
    %408 = vsyncpa %s407, 1
    %409 = vsyncpa [#allocation6], 1
    %410 = vsyncpa [#allocation4], 1
    %s411 = scalar_lea.sflag [#allocation4], 1
    %412 = vsyncpa %s411, 1

</llo_original>
